<compile_context>
chip_gen: v5e
topology: v5e:2x2
jax: 0.10.0
libtpu: 0.0.40
codegen_flags: <defaults>
</compile_context>

<pallas_src>
import functools

import jax
import jax.numpy as jnp
import numpy as np
from jax import lax
from jax.experimental import pallas as pl
from jax.experimental.pallas import tpu as pltpu

NEG_INF = -1e12


# ---------------------------------------------------------------------------
# Pallas kernel: per (batch, head, q-tile) -> logits tile [TQ, S]
# ---------------------------------------------------------------------------
def global_pointer_kernel(x_ref, w_ref, b_ref, cos_ref, sin_ref, m_ref, bias_ref,
                          o_ref, kr_ref, *, inner_dim, q_tile, mm_dtype):
    d = inner_dim
    half = d // 2
    qi = pl.program_id(2)

    w_q = w_ref[0, 0]            # [H, d]  (half-rotary column layout)
    w_k = w_ref[0, 1]            # [H, d]
    b_q = b_ref[0, 0]            # [1, d]
    b_k = b_ref[0, 1]            # [1, d]

    # ---- K path: projection + RoPE + n-axis mask over the FULL sequence.
    # Computed once per (batch, head) (when the q-tile index resets) and cached
    # in VMEM scratch, then reused by every q tile -> no recompute from tiling.
    @pl.when(qi == 0)
    def _():
        x_all = x_ref[0]                                        # [S, H]
        kproj = jnp.dot(x_all.astype(mm_dtype), w_k.astype(mm_dtype),
                        preferred_element_type=jnp.float32) + b_k
        ka, kb = kproj[:, :half], kproj[:, half:]
        cos = cos_ref[...]                                      # [S, d/2]
        sin = sin_ref[...]                                      # [S, d/2]
        kr = jnp.concatenate([ka * cos - kb * sin,
                              kb * cos + ka * sin], axis=-1)    # [S, d]
        kr_ref[...] = kr * m_ref[0]        # fold key-axis sequence mask into K

    # ---- Q path for the current q tile.
    row0 = pl.multiple_of(qi * q_tile, q_tile)
    x_t = x_ref[0, pl.ds(row0, q_tile), :]                      # [TQ, H]
    qproj = jnp.dot(x_t.astype(mm_dtype), w_q.astype(mm_dtype),
                    preferred_element_type=jnp.float32) + b_q
    qa, qb = qproj[:, :half], qproj[:, half:]
    cos_t = cos_ref[pl.ds(row0, q_tile), :]
    sin_t = sin_ref[pl.ds(row0, q_tile), :]
    qr = jnp.concatenate([qa * cos_t - qb * sin_t,
                          qb * cos_t + qa * sin_t], axis=-1)    # [TQ, d]
    qr = qr * m_ref[0, pl.ds(row0, q_tile), :]  # fold query-axis mask into Q

    # ---- logits tile: one MXU dot + one add (mask/tril bias precomputed).
    lg = lax.dot_general(qr.astype(mm_dtype), kr_ref[...].astype(mm_dtype),
                         (((1,), (1,)), ((), ())),
                         preferred_element_type=jnp.float32)    # [TQ, S]
    o_ref[0, 0] = lg + bias_ref[0]


# ---------------------------------------------------------------------------
# Wrapper: weight permutation to half-rotary layout, RoPE tables, mask bias
# ---------------------------------------------------------------------------
def _pick_q_tile(seq_len):
    for cand in (256, 128, 64, 32, 16, 8):
        if seq_len % cand == 0:
            return cand
    return seq_len


def make_rope_tables_half(seq_len, d):
    pos = jnp.arange(seq_len, dtype=jnp.float32)
    idx = jnp.arange(d // 2, dtype=jnp.float32)
    inv = jnp.power(10000.0, -2.0 * idx / d)
    ang = pos[:, None] * inv[None, :]                 # [S, d/2]
    return jnp.cos(ang), jnp.sin(ang)                 # un-duplicated tables


def global_pointer_forward(x, mask, w, b, *, head_size, inner_dim,
                           matmul_dtype=jnp.float32, permute_output=True):
    B, S, H = x.shape
    d = inner_dim
    half = d // 2
    assert d % 2 == 0
    assert w.shape == (H, head_size * 2 * d)
    q_tile = _pick_q_tile(S)
    nq = S // q_tile

    # Re-order dense weight / bias columns per head to half-rotary layout:
    #   per head, per {q,k}:  [even components (d/2) | odd components (d/2)]
    # so RoPE is two contiguous slices (VPU) instead of a stride-2 interleave or
    # a d x d MXU matmul.  The S x S logits are invariant to this permutation of
    # the contraction axis (same products, different summation order).
    w_hr = w.reshape(H, head_size, 2, half, 2)
    w_hr = jnp.transpose(w_hr, (1, 2, 0, 4, 3)).reshape(head_size, 2, H, d)
    b_hr = b.reshape(head_size, 2, half, 2)
    b_hr = jnp.transpose(b_hr, (0, 1, 3, 2)).reshape(head_size, 2, 1, d)

    cos_h, sin_h = make_rope_tables_half(S, d)        # [S, d/2] each

    m = mask.astype(jnp.float32)                      # [B, S]
    m_col = m[:, :, None]                             # [B, S, 1]  (folded into Q/K rows)
    # Additive mask + tril bias hoisted out of the per-head epilogue: computed
    # once per batch element (vs. head x per-tile recompute in the kernel), and
    # algebraically identical to the sequential two-step masking for 0/1 masks.
    mm = m[:, :, None] * m[:, None, :]                # [B, S, S]
    tril = jnp.tril(jnp.ones((S, S), jnp.float32), k=-1)
    mask_bias = NEG_INF * (1.0 - mm) - tril * 1e12    # [B, S, S]

    kernel = functools.partial(global_pointer_kernel, inner_dim=d,
                               q_tile=q_tile, mm_dtype=matmul_dtype)

    out = pl.pallas_call(
        kernel,
        out_shape=jax.ShapeDtypeStruct((B, head_size, S, S), jnp.float32),
        grid_spec=pltpu.PrefetchScalarGridSpec(
            num_scalar_prefetch=0,
            grid=(B, head_size, nq),
            in_specs=[
                pl.BlockSpec((1, S, H), lambda bi, h, qi: (bi, 0, 0)),        # x
                pl.BlockSpec((1, 2, H, d), lambda bi, h, qi: (h, 0, 0, 0)),   # W (per head)
                pl.BlockSpec((1, 2, 1, d), lambda bi, h, qi: (h, 0, 0, 0)),   # dense bias
                pl.BlockSpec((S, half), lambda bi, h, qi: (0, 0)),            # cos table
                pl.BlockSpec((S, half), lambda bi, h, qi: (0, 0)),            # sin table
                pl.BlockSpec((1, S, 1), lambda bi, h, qi: (bi, 0, 0)),        # seq mask (col)
                pl.BlockSpec((1, q_tile, S), lambda bi, h, qi: (bi, qi, 0)),  # mask/tril bias
            ],
            out_specs=pl.BlockSpec((1, 1, q_tile, S),
                                   lambda bi, h, qi: (bi, h, qi, 0)),
            scratch_shapes=[pltpu.VMEM((S, d), jnp.float32)],                 # cached K
        ),
        compiler_params=pltpu.CompilerParams(
            dimension_semantics=("parallel", "parallel", "arbitrary"),
            vmem_limit_bytes=48 * 1024 * 1024,
        ),
    )(x, w_hr, b_hr, cos_h, sin_h, m_col, mask_bias)

    if permute_output:
        # PyTorch: logits.permute(0, 2, 3, 1) -> [B, S, S, head].  Consumers that
        # can accept the lane-dense [B, head, S, S] layout should pass
        # permute_output=False and skip this extra HBM round trip.
        return jnp.transpose(out, (0, 2, 3, 1))
    return out


# ---------------------------------------------------------------------------
# Pure-JAX reference mirroring the PyTorch forward (for verification)
# ---------------------------------------------------------------------------
def reference_forward(x, mask, w, b, *, head_size, inner_dim):
    B, S, H = x.shape
    d = inner_dim
    proj = x @ w + b                                        # [B, S, head*2*d]
    proj = proj.reshape(B, S, head_size, 2 * d)
    qw, kw = proj[..., :d], proj[..., d:]

    pos = jnp.arange(S, dtype=jnp.float32)
    idx = jnp.arange(d // 2, dtype=jnp.float32)
    inv = jnp.power(10000.0, -2.0 * idx / d)
    ang = pos[:, None] * inv[None, :]
    cos_pos = jnp.repeat(jnp.cos(ang), 2, axis=-1)[None, :, None, :]
    sin_pos = jnp.repeat(jnp.sin(ang), 2, axis=-1)[None, :, None, :]

    def rot_half(t):
        t2 = jnp.stack([-t[..., 1::2], t[..., ::2]], axis=-1)
        return t2.reshape(t.shape)

    qw = qw * cos_pos + rot_half(qw) * sin_pos
    kw = kw * cos_pos + rot_half(kw) * sin_pos

    logits = jnp.einsum('bmhd,bnhd->bhmn', qw, kw)
    m = mask.astype(logits.dtype)
    logits = logits * m[:, None, :, None] + NEG_INF * (1 - m[:, None, :, None])
    logits = logits * m[:, None, None, :] + NEG_INF * (1 - m[:, None, None, :])
    tril = jnp.tril(jnp.ones((S, S), logits.dtype), k=-1)
    logits = logits - tril * 1e12
    return jnp.transpose(logits, (0, 2, 3, 1))


if __name__ == "__main__":
    B, S, H = 2, 8, 32
    head_size, inner_dim = 4, 8

    key = jax.random.PRNGKey(0)
    k1, k2, k3 = jax.random.split(key, 3)
    x = jax.random.normal(k1, (B, S, H), dtype=jnp.float32)
    # deterministic synthetic parameters (nn.Linear(hidden, head*inner_dim*2))
    w = jax.random.normal(k2, (H, head_size * 2 * inner_dim), dtype=jnp.float32) * 0.05
    b = jax.random.normal(k3, (head_size * 2 * inner_dim,), dtype=jnp.float32) * 0.05
    lengths = jnp.array([8, 5])
    mask = (jnp.arange(S)[None, :] < lengths[:, None]).astype(jnp.float32)

    ref = reference_forward(x, mask, w, b,
                            head_size=head_size, inner_dim=inner_dim)

    # f32 MXU path (default)
    out = global_pointer_forward(x, mask, w, b,
                                 head_size=head_size, inner_dim=inner_dim)
    out = jax.block_until_ready(out)
    assert out.shape == (B, S, S, head_size)
    if not np.allclose(np.asarray(out), np.asarray(ref), rtol=1e-3, atol=1e-2):
        raise SystemExit("mismatch vs reference (f32 path)")

    # bf16 MXU inputs (v6e/v7x throughput lever), f32 accumulation.
    out_bf16 = global_pointer_forward(x, mask, w, b,
                                      head_size=head_size, inner_dim=inner_dim,
                                      matmul_dtype=jnp.bfloat16)
    out_bf16 = jax.block_until_ready(out_bf16)
    if not np.allclose(np.asarray(out_bf16), np.asarray(ref), rtol=1e-2, atol=5e-2):
        raise SystemExit("mismatch vs reference (bf16 path)")

    print("KERNEL_OK")
</pallas_src>

<mosaic_0001>
module attributes {stable_mosaic.version = 11 : i64} {
  func.func @global_pointer_kernel(%arg0: i32, %arg1: i32, %arg2: i32, %arg3: memref<1x8x32xf32, #tpu.memory_space<vmem>>, %arg4: memref<1x2x32x8xf32, #tpu.memory_space<vmem>>, %arg5: memref<1x2x1x8xf32, #tpu.memory_space<vmem>>, %arg6: memref<8x4xf32, #tpu.memory_space<vmem>>, %arg7: memref<8x4xf32, #tpu.memory_space<vmem>>, %arg8: memref<1x8x1xf32, #tpu.memory_space<vmem>>, %arg9: memref<1x8x8xf32, #tpu.memory_space<vmem>>, %arg10: memref<1x1x8x8xf32, #tpu.memory_space<vmem>>, %arg11: memref<8x8xf32, #tpu.memory_space<vmem>>) attributes {dimension_semantics = [#tpu.dimension_semantics<parallel>, #tpu.dimension_semantics<parallel>, #tpu.dimension_semantics<arbitrary>], iteration_bounds = array<i64: 2, 4, 1>, scalar_prefetch = 0 : i64, scratch_operands = 1 : i64, tpu.core_type = #tpu.core_type<tc>, window_params = [{transform_indices = @transform_0, window_bounds = array<i64: 1, 8, 32>}, {transform_indices = @transform_1, window_bounds = array<i64: 1, 2, 32, 8>}, {transform_indices = @transform_2, window_bounds = array<i64: 1, 2, 1, 8>}, {pipeline_mode = #tpu.pipeline_mode<synchronous>, transform_indices = @transform_3, window_bounds = array<i64: 8, 4>}, {pipeline_mode = #tpu.pipeline_mode<synchronous>, transform_indices = @transform_4, window_bounds = array<i64: 8, 4>}, {transform_indices = @transform_5, window_bounds = array<i64: 1, 8, 1>}, {transform_indices = @transform_6, window_bounds = array<i64: 1, 8, 8>}, {transform_indices = @transform_7, window_bounds = array<i64: 1, 1, 8, 8>}]} {
    %c0 = arith.constant 0 : index
    %c0_0 = arith.constant 0 : index
    %c0_1 = arith.constant 0 : index
    %c0_2 = arith.constant 0 : index
    %0 = vector.load %arg4[%c0, %c0_0, %c0_1, %c0_2] : memref<1x2x32x8xf32, #tpu.memory_space<vmem>>, vector<1x1x32x8xf32>
    %1 = vector.shape_cast %0 : vector<1x1x32x8xf32> to vector<32x8xf32>
    %c0_3 = arith.constant 0 : index
    %c1 = arith.constant 1 : index
    %c0_4 = arith.constant 0 : index
    %c0_5 = arith.constant 0 : index
    %2 = vector.load %arg4[%c0_3, %c1, %c0_4, %c0_5] : memref<1x2x32x8xf32, #tpu.memory_space<vmem>>, vector<1x1x32x8xf32>
    %3 = vector.shape_cast %2 : vector<1x1x32x8xf32> to vector<32x8xf32>
    %c0_6 = arith.constant 0 : index
    %c0_7 = arith.constant 0 : index
    %c0_8 = arith.constant 0 : index
    %c0_9 = arith.constant 0 : index
    %4 = vector.load %arg5[%c0_6, %c0_7, %c0_8, %c0_9] : memref<1x2x1x8xf32, #tpu.memory_space<vmem>>, vector<1x1x1x8xf32>
    %5 = vector.shape_cast %4 : vector<1x1x1x8xf32> to vector<1x8xf32>
    %c0_10 = arith.constant 0 : index
    %c1_11 = arith.constant 1 : index
    %c0_12 = arith.constant 0 : index
    %c0_13 = arith.constant 0 : index
    %6 = vector.load %arg5[%c0_10, %c1_11, %c0_12, %c0_13] : memref<1x2x1x8xf32, #tpu.memory_space<vmem>>, vector<1x1x1x8xf32>
    %7 = vector.shape_cast %6 : vector<1x1x1x8xf32> to vector<1x8xf32>
    %c0_i32 = arith.constant 0 : i32
    %8 = arith.cmpi eq, %arg2, %c0_i32 : i32
    %9 = arith.extui %8 : i1 to i32
    %c0_i32_14 = arith.constant 0 : i32
    %10 = arith.cmpi ne, %9, %c0_i32_14 : i32
    scf.if %10 {
      %c0_31 = arith.constant 0 : index
      %c0_32 = arith.constant 0 : index
      %c0_33 = arith.constant 0 : index
      %45 = vector.load %arg3[%c0_31, %c0_32, %c0_33] : memref<1x8x32xf32, #tpu.memory_space<vmem>>, vector<1x8x32xf32>
      %46 = vector.shape_cast %45 : vector<1x8x32xf32> to vector<8x32xf32>
      %cst_34 = arith.constant dense<0.000000e+00> : vector<8x8xf32>
      %47 = tpu.matmul %46, %3, %cst_34 {dimension_numbers = #tpu.dot_dimension_numbers<[1], [0], [0], [1], [0, 0, 1, 1], [], []>} : vector<8x32xf32>, vector<32x8xf32>, vector<8x8xf32> -> vector<8x8xf32>
      %48 = vector.broadcast %7 : vector<1x8xf32> to vector<8x8xf32>
      %49 = arith.addf %47, %48 : vector<8x8xf32>
      %50 = vector.extract_strided_slice %49 {offsets = [0, 0], sizes = [8, 4], strides = [1, 1]} : vector<8x8xf32> to vector<8x4xf32>
      %51 = vector.extract_strided_slice %49 {offsets = [0, 4], sizes = [8, 4], strides = [1, 1]} : vector<8x8xf32> to vector<8x4xf32>
      %c0_35 = arith.constant 0 : index
      %c0_36 = arith.constant 0 : index
      %52 = vector.load %arg6[%c0_35, %c0_36] : memref<8x4xf32, #tpu.memory_space<vmem>>, vector<8x4xf32>
      %c0_37 = arith.constant 0 : index
      %c0_38 = arith.constant 0 : index
      %53 = vector.load %arg7[%c0_37, %c0_38] : memref<8x4xf32, #tpu.memory_space<vmem>>, vector<8x4xf32>
      %54 = arith.mulf %50, %52 : vector<8x4xf32>
      %55 = arith.mulf %51, %53 : vector<8x4xf32>
      %56 = arith.subf %54, %55 : vector<8x4xf32>
      %57 = arith.mulf %51, %52 : vector<8x4xf32>
      %58 = arith.mulf %50, %53 : vector<8x4xf32>
      %59 = arith.addf %57, %58 : vector<8x4xf32>
      %60 = tpu.concatenate %56, %59 in 1 : vector<8x4xf32>, vector<8x4xf32> -> vector<8x8xf32>
      %c0_39 = arith.constant 0 : index
      %c0_40 = arith.constant 0 : index
      %c0_41 = arith.constant 0 : index
      %61 = vector.load %arg8[%c0_39, %c0_40, %c0_41] : memref<1x8x1xf32, #tpu.memory_space<vmem>>, vector<1x8x1xf32>
      %62 = vector.shape_cast %61 : vector<1x8x1xf32> to vector<8x1xf32>
      %63 = vector.broadcast %62 : vector<8x1xf32> to vector<8x8xf32>
      %64 = arith.mulf %60, %63 : vector<8x8xf32>
      %c0_42 = arith.constant 0 : index
      %c0_43 = arith.constant 0 : index
      %65 = vector.load %arg11[%c0_42, %c0_43] : memref<8x8xf32, #tpu.memory_space<vmem>>, vector<8x8xf32>
      tpu.vector_store %arg11[%c0_42, %c0_43], %64 {strides = array<i32>} : memref<8x8xf32, #tpu.memory_space<vmem>>, vector<8x8xf32>,
    } else {
    }
    %c8_i32 = arith.constant 8 : i32
    %11 = arith.muli %arg2, %c8_i32 : i32
    %12 = tpu.assume_multiple %11, 8 : i32
    %c0_15 = arith.constant 0 : index
    %13 = arith.index_cast %12 : i32 to index
    %c0_16 = arith.constant 0 : index
    %14 = vector.load %arg3[%c0_15, %13, %c0_16] : memref<1x8x32xf32, #tpu.memory_space<vmem>>, vector<1x8x32xf32>
    %15 = vector.shape_cast %14 : vector<1x8x32xf32> to vector<8x32xf32>
    %cst = arith.constant dense<0.000000e+00> : vector<8x8xf32>
    %16 = tpu.matmul %15, %1, %cst {dimension_numbers = #tpu.dot_dimension_numbers<[1], [0], [0], [1], [0, 0, 1, 1], [], []>} : vector<8x32xf32>, vector<32x8xf32>, vector<8x8xf32> -> vector<8x8xf32>
    %17 = vector.broadcast %5 : vector<1x8xf32> to vector<8x8xf32>
    %18 = arith.addf %16, %17 : vector<8x8xf32>
    %19 = vector.extract_strided_slice %18 {offsets = [0, 0], sizes = [8, 4], strides = [1, 1]} : vector<8x8xf32> to vector<8x4xf32>
    %20 = vector.extract_strided_slice %18 {offsets = [0, 4], sizes = [8, 4], strides = [1, 1]} : vector<8x8xf32> to vector<8x4xf32>
    %21 = arith.index_cast %12 : i32 to index
    %c0_17 = arith.constant 0 : index
    %22 = vector.load %arg6[%21, %c0_17] : memref<8x4xf32, #tpu.memory_space<vmem>>, vector<8x4xf32>
    %23 = arith.index_cast %12 : i32 to index
    %c0_18 = arith.constant 0 : index
    %24 = vector.load %arg7[%23, %c0_18] : memref<8x4xf32, #tpu.memory_space<vmem>>, vector<8x4xf32>
    %25 = arith.mulf %19, %22 : vector<8x4xf32>
    %26 = arith.mulf %20, %24 : vector<8x4xf32>
    %27 = arith.subf %25, %26 : vector<8x4xf32>
    %28 = arith.mulf %20, %22 : vector<8x4xf32>
    %29 = arith.mulf %19, %24 : vector<8x4xf32>
    %30 = arith.addf %28, %29 : vector<8x4xf32>
    %31 = tpu.concatenate %27, %30 in 1 : vector<8x4xf32>, vector<8x4xf32> -> vector<8x8xf32>
    %c0_19 = arith.constant 0 : index
    %32 = arith.index_cast %12 : i32 to index
    %c0_20 = arith.constant 0 : index
    %33 = vector.load %arg8[%c0_19, %32, %c0_20] : memref<1x8x1xf32, #tpu.memory_space<vmem>>, vector<1x8x1xf32>
    %34 = vector.shape_cast %33 : vector<1x8x1xf32> to vector<8x1xf32>
    %35 = vector.broadcast %34 : vector<8x1xf32> to vector<8x8xf32>
    %36 = arith.mulf %31, %35 : vector<8x8xf32>
    %c0_21 = arith.constant 0 : index
    %c0_22 = arith.constant 0 : index
    %37 = vector.load %arg11[%c0_21, %c0_22] : memref<8x8xf32, #tpu.memory_space<vmem>>, vector<8x8xf32>
    %cst_23 = arith.constant dense<0.000000e+00> : vector<8x8xf32>
    %38 = tpu.matmul %36, %37, %cst_23 {dimension_numbers = #tpu.dot_dimension_numbers<[1], [1], [0], [0], [0, 0, 1, 0], [], []>} : vector<8x8xf32>, vector<8x8xf32>, vector<8x8xf32> -> vector<8x8xf32>
    %c0_24 = arith.constant 0 : index
    %c0_25 = arith.constant 0 : index
    %c0_26 = arith.constant 0 : index
    %39 = vector.load %arg9[%c0_24, %c0_25, %c0_26] : memref<1x8x8xf32, #tpu.memory_space<vmem>>, vector<1x8x8xf32>
    %40 = vector.shape_cast %39 : vector<1x8x8xf32> to vector<8x8xf32>
    %41 = arith.addf %38, %40 : vector<8x8xf32>
    %c0_27 = arith.constant 0 : index
    %c0_28 = arith.constant 0 : index
    %c0_29 = arith.constant 0 : index
    %c0_30 = arith.constant 0 : index
    %42 = vector.load %arg10[%c0_27, %c0_28, %c0_29, %c0_30] : memref<1x1x8x8xf32, #tpu.memory_space<vmem>>, vector<1x1x8x8xf32>
    %43 = vector.shape_cast %42 : vector<1x1x8x8xf32> to vector<8x8xf32>
    %44 = vector.shape_cast %41 : vector<8x8xf32> to vector<1x1x8x8xf32>
    tpu.vector_store %arg10[%c0_27, %c0_28, %c0_29, %c0_30], %44 {strides = array<i32>} : memref<1x1x8x8xf32, #tpu.memory_space<vmem>>, vector<1x1x8x8xf32>,
    return
  }
  func.func @transform_0(%arg0: i32, %arg1: i32, %arg2: i32) -> (i32, i32, i32) {
    %c0_i32 = arith.constant 0 : i32
    %c0_i32_0 = arith.constant 0 : i32
    %c0_i32_1 = arith.constant 0 : i32
    return %arg0, %c0_i32, %c0_i32_0 : i32, i32, i32
  }
  func.func @transform_1(%arg0: i32, %arg1: i32, %arg2: i32) -> (i32, i32, i32, i32) {
    %c0_i32 = arith.constant 0 : i32
    %c0_i32_0 = arith.constant 0 : i32
    %c0_i32_1 = arith.constant 0 : i32
    %c0_i32_2 = arith.constant 0 : i32
    return %arg1, %c0_i32, %c0_i32_0, %c0_i32_1 : i32, i32, i32, i32
  }
  func.func @transform_2(%arg0: i32, %arg1: i32, %arg2: i32) -> (i32, i32, i32, i32) {
    %c0_i32 = arith.constant 0 : i32
    %c0_i32_0 = arith.constant 0 : i32
    %c0_i32_1 = arith.constant 0 : i32
    %c0_i32_2 = arith.constant 0 : i32
    return %arg1, %c0_i32, %c0_i32_0, %c0_i32_1 : i32, i32, i32, i32
  }
  func.func @transform_3(%arg0: i32, %arg1: i32, %arg2: i32) -> (i32, i32) {
    %c0_i32 = arith.constant 0 : i32
    %c0_i32_0 = arith.constant 0 : i32
    %c0_i32_1 = arith.constant 0 : i32
    return %c0_i32, %c0_i32_0 : i32, i32
  }
  func.func @transform_4(%arg0: i32, %arg1: i32, %arg2: i32) -> (i32, i32) {
    %c0_i32 = arith.constant 0 : i32
    %c0_i32_0 = arith.constant 0 : i32
    %c0_i32_1 = arith.constant 0 : i32
    return %c0_i32, %c0_i32_0 : i32, i32
  }
  func.func @transform_5(%arg0: i32, %arg1: i32, %arg2: i32) -> (i32, i32, i32) {
    %c0_i32 = arith.constant 0 : i32
    %c0_i32_0 = arith.constant 0 : i32
    %c0_i32_1 = arith.constant 0 : i32
    return %arg0, %c0_i32, %c0_i32_0 : i32, i32, i32
  }
  func.func @transform_6(%arg0: i32, %arg1: i32, %arg2: i32) -> (i32, i32, i32) {
    %c0_i32 = arith.constant 0 : i32
    %c0_i32_0 = arith.constant 0 : i32
    return %arg0, %arg2, %c0_i32 : i32, i32, i32
  }
  func.func @transform_7(%arg0: i32, %arg1: i32, %arg2: i32) -> (i32, i32, i32, i32) {
    %c0_i32 = arith.constant 0 : i32
    %c0_i32_0 = arith.constant 0 : i32
    return %arg0, %arg1, %arg2, %c0_i32 : i32, i32, i32, i32
  }
}

</mosaic_0001>

<llo_original>
// kernel: tpu_custom_call.1
$region0: #{tpu_custom_call.1}
  #allocation0 [shape = 'u32[]', space=smem, size = 0x4, offset = 0x4, fixed_abs, tag = 'smem constant byte address 0x4 - core index']
  #allocation1 [shape = 'u32[72,128]{1,0:T(1,128)}', space=vmem, size = 0x9000, scoped, tag = 'internal scratch']
  #allocation2 [shape = 'f32[8,8]{1,0:T(8,128)}', space=vmem, size = 0x1000, scoped, tag = 'scratch operand']
  %s0 = inlined_call_operand.vmem [shape: f32[2,8,32], index: 0, kind: input, shape index: {}]
  %s1 = inlined_call_operand.vmem [shape: f32[4,2,32,8], index: 1, kind: input, shape index: {}]
  %s2 = inlined_call_operand.vmem [shape: f32[4,2,1,8], index: 2, kind: input, shape index: {}]
  %s3 = inlined_call_operand.vmem [shape: f32[8,4], index: 3, kind: input, shape index: {}]
  %s4 = inlined_call_operand.vmem [shape: f32[8,4], index: 4, kind: input, shape index: {}]
  %s5 = inlined_call_operand.vmem [shape: f32[2,8,1], index: 5, kind: input, shape index: {}]
  %s6 = inlined_call_operand.vmem [shape: f32[2,8,8], index: 6, kind: input, shape index: {}]
  %s7 = inlined_call_operand.hbm [shape: f32[2,4,8,8], index: 7, kind: output, shape index: {}]
  %s8 = sld [smem:[#allocation0]]
  $region65: #{tpu_custom_call.1} parent=0
    _
  %s10 = ssub.s32 1, %s8
  %s11 = scalar_select 0, %s10, %s8
  $region1: #{tpu_custom_call.1} parent=0
    #allocation3 [shape = 'u8[8192]{0}', space=vmem, size = 0x2000, scoped, tag = 'output window, operand 0']
    #allocation4 [shape = 's32[2]{0}', space=sflag, size = 0x8, scoped, tag = 'scoped memory for tpu_custom_call.1']
    %12 = vsyncpa [#allocation4], 0
    %s13 = scalar_lea.sflag [#allocation4], 1
    %14 = vsyncpa %s13, 0
    loop: start=0, step=1, limit=10
    $region2: #{tpu_custom_call.1} parent=1 // loop_pre_header
      _
    $region3: #{tpu_custom_call.1} parent=1 // loop_header
      %s16 = sphi 0, %s20
      %p17 = scmp.ge.s32.totalorder %s16, 10
      %s23 = sphi 0, %s42
      %s24 = sphi 0, %s38
      %s25 = sphi 0, %s34
      %s26 = sphi 0, %s23
      %s27 = sphi 0, %s24
      %s28 = sphi 0, %s25
      %s29 = sphi 0, %s26
      %s30 = sphi 0, %s27
      %s31 = sphi 0, %s28
      %s45 = sphi 0, %s47
      %s48 = sphi 0, %s45
      %s49 = sphi 0, %s48
      %s65 = sphi 0, %s49
      %s71 = sphi 0, %s73
      %s74 = sphi 0, %s71
      %s75 = sphi 0, %s74
      %s91 = sphi 0, %s75
      %s97 = sphi 0, %s99
      %s100 = sphi 0, %s97
      %s101 = sphi 0, %s100
      %s117 = sphi 0, %s101
      %s121 = sphi 0, %s121
      %s123 = sphi 0, %s121
      %s124 = sphi 0, %s123
      %s138 = sphi 0, %s124
      %s142 = sphi 0, %s142
      %s144 = sphi 0, %s142
      %s145 = sphi 0, %s144
      %s159 = sphi 0, %s145
      %s165 = sphi 0, %s167
      %s168 = sphi 0, %s165
      %s169 = sphi 0, %s168
      %s185 = sphi 0, %s169
      %s193 = sphi 0, %s195
      %s196 = sphi 0, %s193
      %s197 = sphi 0, %s196
      %s213 = sphi 0, %s197
      %s223 = sphi 0, %s225
      %s226 = sphi 0, %s223
      %s227 = sphi 0, %s226
      %s243 = sphi 0, %s227
    $region4: #{tpu_custom_call.1} parent=1 // loop_header_branch
      %19 = sbr.rel (%p17) target = $region8
    $region5: #{tpu_custom_call.1} parent=1 // loop_body
      %s21 = ssub.s32 %s16, 1
      %s22 = ssub.s32 %s16, 2
      %s32 = sadd.s32 1, %s25
      %p33 = scmp.ge.s32.totalorder %s32, 1
      %s34 = scalar_select %p33, 0, %s32
      %s35 = sadd.s32 1, %s24
      %s36 = scalar_select %p33, %s35, %s24
      %p37 = scmp.ge.s32.totalorder %s36, 4
      %s38 = scalar_select %p37, 0, %s36
      %s39 = sadd.s32 1, %s23
      %s40 = scalar_select %p37, %s39, %s23
      %p41 = scmp.ge.s32.totalorder %s40, 2
      %s42 = scalar_select %p41, 0, %s40
      %s43 = ssub.s32 %s23, %s42
      %p44 = scmp.eq.s32.totalorder %s43, 0
      %s46 = sadd.s32 %s45, 1
      %s47 = scalar_select %p44, %s45, %s46
      %p50 = pneg %p44
      %p51 = scmp.eq.s32.totalorder %s16, 7
      %p52 = por %p50, %p51
      %p53 = scmp.ne.s32.totalorder %s45, %s48
      %p54 = scmp.eq.s32.totalorder %s16, 0
      %p55 = por %p53, %p54
      %p56 = scmp.ne.s32.totalorder %s45, %s48
      %p57 = scmp.eq.s32.totalorder %s21, 7
      %p58 = por %p56, %p57
      %p59 = scmp.ne.s32.totalorder %s48, %s49
      %p60 = scmp.eq.s32.totalorder %s21, 0
      %p61 = por %p59, %p60
      %p62 = scmp.ne.s32.totalorder %s48, %s49
      %p63 = scmp.eq.s32.totalorder %s22, 7
      %p64 = por %p62, %p63
      %p66 = scmp.ne.s32.totalorder %s49, %s65
      %p67 = scmp.eq.s32.totalorder %s22, 0
      %p68 = por %p66, %p67
      %s69 = ssub.s32 %s24, %s38
      %p70 = scmp.eq.s32.totalorder %s69, 0
      %s72 = sadd.s32 %s71, 1
      %s73 = scalar_select %p70, %s71, %s72
      %p76 = pneg %p70
      %p77 = scmp.eq.s32.totalorder %s16, 7
      %p78 = por %p76, %p77
      %p79 = scmp.ne.s32.totalorder %s71, %s74
      %p80 = scmp.eq.s32.totalorder %s16, 0
      %p81 = por %p79, %p80
      %p82 = scmp.ne.s32.totalorder %s71, %s74
      %p83 = scmp.eq.s32.totalorder %s21, 7
      %p84 = por %p82, %p83
      %p85 = scmp.ne.s32.totalorder %s74, %s75
      %p86 = scmp.eq.s32.totalorder %s21, 0
      %p87 = por %p85, %p86
      %p88 = scmp.ne.s32.totalorder %s74, %s75
      %p89 = scmp.eq.s32.totalorder %s22, 7
      %p90 = por %p88, %p89
      %p92 = scmp.ne.s32.totalorder %s75, %s91
      %p93 = scmp.eq.s32.totalorder %s22, 0
      %p94 = por %p92, %p93
      %s95 = ssub.s32 %s24, %s38
      %p96 = scmp.eq.s32.totalorder %s95, 0
      %s98 = sadd.s32 %s97, 1
      %s99 = scalar_select %p96, %s97, %s98
      %p102 = pneg %p96
      %p103 = scmp.eq.s32.totalorder %s16, 7
      %p104 = por %p102, %p103
      %p105 = scmp.ne.s32.totalorder %s97, %s100
      %p106 = scmp.eq.s32.totalorder %s16, 0
      %p107 = por %p105, %p106
      %p108 = scmp.ne.s32.totalorder %s97, %s100
      %p109 = scmp.eq.s32.totalorder %s21, 7
      %p110 = por %p108, %p109
      %p111 = scmp.ne.s32.totalorder %s100, %s101
      %p112 = scmp.eq.s32.totalorder %s21, 0
      %p113 = por %p111, %p112
      %p114 = scmp.ne.s32.totalorder %s100, %s101
      %p115 = scmp.eq.s32.totalorder %s22, 7
      %p116 = por %p114, %p115
      %p118 = scmp.ne.s32.totalorder %s101, %s117
      %p119 = scmp.eq.s32.totalorder %s22, 0
      %p120 = por %p118, %p119
      %s122 = sadd.s32 %s121, 1
      %p125 = scmp.eq.s32.totalorder %s16, 7
      %p126 = scmp.ne.s32.totalorder %s121, %s123
      %p127 = scmp.eq.s32.totalorder %s16, 0
      %p128 = por %p126, %p127
      %p129 = scmp.ne.s32.totalorder %s121, %s123
      %p130 = scmp.eq.s32.totalorder %s21, 7
      %p131 = por %p129, %p130
      %p132 = scmp.ne.s32.totalorder %s123, %s124
      %p133 = scmp.eq.s32.totalorder %s21, 0
      %p134 = por %p132, %p133
      %p135 = scmp.ne.s32.totalorder %s123, %s124
      %p136 = scmp.eq.s32.totalorder %s22, 7
      %p137 = por %p135, %p136
      %p139 = scmp.ne.s32.totalorder %s124, %s138
      %p140 = scmp.eq.s32.totalorder %s22, 0
      %p141 = por %p139, %p140
      %s143 = sadd.s32 %s142, 1
      %p146 = scmp.eq.s32.totalorder %s16, 7
      %p147 = scmp.ne.s32.totalorder %s142, %s144
      %p148 = scmp.eq.s32.totalorder %s16, 0
      %p149 = por %p147, %p148
      %p150 = scmp.ne.s32.totalorder %s142, %s144
      %p151 = scmp.eq.s32.totalorder %s21, 7
      %p152 = por %p150, %p151
      %p153 = scmp.ne.s32.totalorder %s144, %s145
      %p154 = scmp.eq.s32.totalorder %s21, 0
      %p155 = por %p153, %p154
      %p156 = scmp.ne.s32.totalorder %s144, %s145
      %p157 = scmp.eq.s32.totalorder %s22, 7
      %p158 = por %p156, %p157
      %p160 = scmp.ne.s32.totalorder %s145, %s159
      %p161 = scmp.eq.s32.totalorder %s22, 0
      %p162 = por %p160, %p161
      %s163 = ssub.s32 %s23, %s42
      %p164 = scmp.eq.s32.totalorder %s163, 0
      %s166 = sadd.s32 %s165, 1
      %s167 = scalar_select %p164, %s165, %s166
      %p170 = pneg %p164
      %p171 = scmp.eq.s32.totalorder %s16, 7
      %p172 = por %p170, %p171
      %p173 = scmp.ne.s32.totalorder %s165, %s168
      %p174 = scmp.eq.s32.totalorder %s16, 0
      %p175 = por %p173, %p174
      %p176 = scmp.ne.s32.totalorder %s165, %s168
      %p177 = scmp.eq.s32.totalorder %s21, 7
      %p178 = por %p176, %p177
      %p179 = scmp.ne.s32.totalorder %s168, %s169
      %p180 = scmp.eq.s32.totalorder %s21, 0
      %p181 = por %p179, %p180
      %p182 = scmp.ne.s32.totalorder %s168, %s169
      %p183 = scmp.eq.s32.totalorder %s22, 7
      %p184 = por %p182, %p183
      %p186 = scmp.ne.s32.totalorder %s169, %s185
      %p187 = scmp.eq.s32.totalorder %s22, 0
      %p188 = por %p186, %p187
      %s189 = ssub.s32 %s23, %s42
      %s190 = ssub.s32 %s25, %s34
      %s191 = sor.u32 %s189, %s190
      %p192 = scmp.eq.s32.totalorder %s191, 0
      %s194 = sadd.s32 %s193, 1
      %s195 = scalar_select %p192, %s193, %s194
      %p198 = pneg %p192
      %p199 = scmp.eq.s32.totalorder %s16, 7
      %p200 = por %p198, %p199
      %p201 = scmp.ne.s32.totalorder %s193, %s196
      %p202 = scmp.eq.s32.totalorder %s16, 0
      %p203 = por %p201, %p202
      %p204 = scmp.ne.s32.totalorder %s193, %s196
      %p205 = scmp.eq.s32.totalorder %s21, 7
      %p206 = por %p204, %p205
      %p207 = scmp.ne.s32.totalorder %s196, %s197
      %p208 = scmp.eq.s32.totalorder %s21, 0
      %p209 = por %p207, %p208
      %p210 = scmp.ne.s32.totalorder %s196, %s197
      %p211 = scmp.eq.s32.totalorder %s22, 7
      %p212 = por %p210, %p211
      %p214 = scmp.ne.s32.totalorder %s197, %s213
      %p215 = scmp.eq.s32.totalorder %s22, 0
      %p216 = por %p214, %p215
      %s217 = ssub.s32 %s23, %s42
      %s218 = ssub.s32 %s24, %s38
      %s219 = sor.u32 %s217, %s218
      %s220 = ssub.s32 %s25, %s34
      %s221 = sor.u32 %s219, %s220
      %p222 = scmp.eq.s32.totalorder %s221, 0
      %s224 = sadd.s32 %s223, 1
      %s225 = scalar_select %p222, %s223, %s224
      %p228 = pneg %p222
      %p229 = scmp.eq.s32.totalorder %s16, 7
      %p230 = por %p228, %p229
      %p231 = scmp.ne.s32.totalorder %s223, %s226
      %p232 = scmp.eq.s32.totalorder %s16, 0
      %p233 = por %p231, %p232
      %p234 = scmp.ne.s32.totalorder %s223, %s226
      %p235 = scmp.eq.s32.totalorder %s21, 7
      %p236 = por %p234, %p235
      %p237 = scmp.ne.s32.totalorder %s226, %s227
      %p238 = scmp.eq.s32.totalorder %s21, 0
      %p239 = por %p237, %p238
      %p240 = scmp.ne.s32.totalorder %s226, %s227
      %p241 = scmp.eq.s32.totalorder %s22, 7
      %p242 = por %p240, %p241
      %p244 = scmp.ne.s32.totalorder %s227, %s243
      %p245 = scmp.eq.s32.totalorder %s22, 0
      %p246 = por %p244, %p245
      %p247 = scmp.le.s32.totalorder 1, %s16
      %p248 = scmp.lt.s32.totalorder %s16, 9
      %p249 = pnand %p247, %p248
      %p250 = pneg %p249
      // Predicated region
      $region9: #{tpu_custom_call.1} parent=5 // pred_check
        _
      $region10: #{tpu_custom_call.1} parent=5 // pred_check_branch
        %252 = sbr.rel (%p249) target = $region12
      $region11: #{tpu_custom_call.1} parent=5 // pred_region
        %s253 = ssub.s32 %s16, 1
        // Predicated region
        $region13: #{tpu_custom_call.1} parent=11 // pred_check
          %p254 = pneg %p134
        $region14: #{tpu_custom_call.1} parent=11 // pred_check_branch
          %256 = sbr.rel (%p254) target = $region16
        $region15: #{tpu_custom_call.1} parent=11 // pred_region
          _
        $region16: #{tpu_custom_call.1} parent=11 // pred_fallthru
          _
        // Predicated region
        $region17: #{tpu_custom_call.1} parent=11 // pred_check
          %p257 = pneg %p155
        $region18: #{tpu_custom_call.1} parent=11 // pred_check_branch
          %259 = sbr.rel (%p257) target = $region20
        $region19: #{tpu_custom_call.1} parent=11 // pred_region
          _
        $region20: #{tpu_custom_call.1} parent=11 // pred_fallthru
          _
      $region12: #{tpu_custom_call.1} parent=5 // pred_fallthru
        _
      %p260 = scmp.lt.s32.totalorder %s16, 8
      // Predicated region
      $region21: #{tpu_custom_call.1} parent=5 // pred_check
        %p261 = pneg %p260
      $region22: #{tpu_custom_call.1} parent=5 // pred_check_branch
        %263 = sbr.rel (%p261) target = $region24
      $region23: #{tpu_custom_call.1} parent=5 // pred_region
        // Predicated region
        $region25: #{tpu_custom_call.1} parent=23 // pred_check
          %p264 = pneg %p55
        $region26: #{tpu_custom_call.1} parent=23 // pred_check_branch
          %266 = sbr.rel (%p264) target = $region28
        $region27: #{tpu_custom_call.1} parent=23 // pred_region
          %p267 = scmp.lt.s32.totalorder %s23, 1
          %s268 = scalar_select %p267, %s23, 1
          %s269 = smul.addr %s268, 8
          %s270 = scalar_lea.vmem %s0, %s269
        $region28: #{tpu_custom_call.1} parent=23 // pred_fallthru
          _
        // Predicated region
        $region29: #{tpu_custom_call.1} parent=23 // pred_check
          %p271 = pneg %p81
        $region30: #{tpu_custom_call.1} parent=23 // pred_check_branch
          %273 = sbr.rel (%p271) target = $region32
        $region31: #{tpu_custom_call.1} parent=23 // pred_region
          %p274 = scmp.lt.s32.totalorder %s24, 3
          %s275 = scalar_select %p274, %s24, 3
          %s276 = smul.addr %s275, 8
          %s277 = smul.addr %s276, 8
          %s278 = scalar_lea.vmem %s1, %s277
        $region32: #{tpu_custom_call.1} parent=23 // pred_fallthru
          _
        // Predicated region
        $region33: #{tpu_custom_call.1} parent=23 // pred_check
          %p279 = pneg %p107
        $region34: #{tpu_custom_call.1} parent=23 // pred_check_branch
          %281 = sbr.rel (%p279) target = $region36
        $region35: #{tpu_custom_call.1} parent=23 // pred_region
          %p282 = scmp.lt.s32.totalorder %s24, 3
          %s283 = scalar_select %p282, %s24, 3
          %s284 = smul.addr %s283, 2
          %s285 = scalar_lea.vmem %s2, %s284
        $region36: #{tpu_custom_call.1} parent=23 // pred_fallthru
          _
        // Predicated region
        $region37: #{tpu_custom_call.1} parent=23 // pred_check
          %p286 = pneg %p175
        $region38: #{tpu_custom_call.1} parent=23 // pred_check_branch
          %288 = sbr.rel (%p286) target = $region40
        $region39: #{tpu_custom_call.1} parent=23 // pred_region
          %p289 = scmp.lt.s32.totalorder %s23, 1
          %s290 = scalar_select %p289, %s23, 1
          %s291 = smul.addr %s290, 8
          %s292 = scalar_lea.vmem %s5, %s291
        $region40: #{tpu_custom_call.1} parent=23 // pred_fallthru
          _
        // Predicated region
        $region41: #{tpu_custom_call.1} parent=23 // pred_check
          %p293 = pneg %p203
        $region42: #{tpu_custom_call.1} parent=23 // pred_check_branch
          %295 = sbr.rel (%p293) target = $region44
        $region43: #{tpu_custom_call.1} parent=23 // pred_region
          %p296 = scmp.lt.s32.totalorder %s23, 1
          %s297 = scalar_select %p296, %s23, 1
          %p298 = scmp.lt.s32.totalorder %s25, 0
          %s299 = scalar_select %p298, %s25, 0
          %s300 = sadd.s32 %s299, %s297
          %s301 = smul.addr %s300, 8
          %s302 = scalar_lea.vmem %s6, %s301
        $region44: #{tpu_custom_call.1} parent=23 // pred_fallthru
          _
      $region24: #{tpu_custom_call.1} parent=5 // pred_fallthru
        _
      %p303 = scmp.le.s32.totalorder 1, %s16
      %p304 = scmp.lt.s32.totalorder %s16, 9
      %p305 = pnand %p303, %p304
      %p306 = pneg %p305
      // Predicated region
      $region45: #{tpu_custom_call.1} parent=5 // pred_check
        _
      $region46: #{tpu_custom_call.1} parent=5 // pred_check_branch
        %308 = sbr.rel (%p305) target = $region48
      $region47: #{tpu_custom_call.1} parent=5 // pred_region
        %s309 = ssub.s32 %s16, 1
        %p310 = scmp.lt.s32.totalorder %s26, 1
        %s311 = scalar_select %p310, %s26, 1
        %s312 = smul.addr %s311, 8
        %s313 = scalar_lea.vmem %s0, %s312
        %p314 = pneg %p61
        %p315 = pneg %p58
        %p316 = scmp.lt.s32.totalorder %s27, 3
        %s317 = scalar_select %p316, %s27, 3
        %s318 = smul.addr %s317, 8
        %s319 = smul.addr %s318, 8
        %s320 = scalar_lea.vmem %s1, %s319
        %p321 = pneg %p87
        %p322 = pneg %p84
        %p323 = scmp.lt.s32.totalorder %s27, 3
        %s324 = scalar_select %p323, %s27, 3
        %s325 = smul.addr %s324, 2
        %s326 = scalar_lea.vmem %s2, %s325
        %p327 = pneg %p113
        %p328 = pneg %p110
        %p329 = pneg %p134
        %p330 = pneg %p131
        %p331 = pneg %p155
        %p332 = pneg %p152
        %p333 = scmp.lt.s32.totalorder %s26, 1
        %s334 = scalar_select %p333, %s26, 1
        %s335 = smul.addr %s334, 8
        %s336 = scalar_lea.vmem %s5, %s335
        %p337 = pneg %p181
        %p338 = pneg %p178
        %p339 = scmp.lt.s32.totalorder %s26, 1
        %s340 = scalar_select %p339, %s26, 1
        %p341 = scmp.lt.s32.totalorder %s28, 0
        %s342 = scalar_select %p341, %s28, 0
        %s343 = sadd.s32 %s342, %s340
        %s344 = smul.addr %s343, 8
        %s345 = scalar_lea.vmem %s6, %s344
        %p346 = pneg %p209
        %p347 = pneg %p206
        %p348 = pneg %p239
        %p349 = pneg %p236
        %s350 = sand.u32 %s226, 1
        %s351 = scalar_lea.sflag [#allocation4], %s350
        %s352 = sand.u32 %s226, 1
        %s353 = smul.addr %s352, 8
        %s354 = scalar_lea.vmem [#allocation3], %s353
        %p355 = scmp.lt.s32.totalorder %s26, 1
        %s356 = scalar_select %p355, %s26, 1
        %s357 = smul.addr %s356, 8
        %s358 = scalar_lea.vmem %s0, %s357
        %p359 = scmp.lt.s32.totalorder %s27, 3
        %s360 = scalar_select %p359, %s27, 3
        %s361 = smul.addr %s360, 8
        %s362 = smul.addr %s361, 8
        %s363 = scalar_lea.vmem %s1, %s362
        %p364 = scmp.lt.s32.totalorder %s27, 3
        %s365 = scalar_select %p364, %s27, 3
        %s366 = smul.addr %s365, 2
        %s367 = scalar_lea.vmem %s2, %s366
        %p368 = scmp.lt.s32.totalorder %s26, 1
        %s369 = scalar_select %p368, %s26, 1
        %s370 = smul.addr %s369, 8
        %s371 = scalar_lea.vmem %s5, %s370
        %p372 = scmp.lt.s32.totalorder %s26, 1
        %s373 = scalar_select %p372, %s26, 1
        %p374 = scmp.lt.s32.totalorder %s28, 0
        %s375 = scalar_select %p374, %s28, 0
        %s376 = sadd.s32 %s375, %s373
        %s377 = smul.addr %s376, 8
        %s378 = scalar_lea.vmem %s6, %s377
        %v379 = vld [vmem:[%s363] sm:$0xff]
        %v380 = vld [vmem:[%s363 + $0x8] sm:$0xff]
        %v381 = vld [vmem:[%s363 + $0x10] sm:$0xff]
        %v382 = vld [vmem:[%s363 + $0x18] sm:$0xff]
        %s383 = scalar_lea.vmem %s363, 32
        %v384 = vld [vmem:[%s383] sm:$0xff]
        %v385 = vld [vmem:[%s383 + $0x8] sm:$0xff]
        %v386 = vld [vmem:[%s383 + $0x10] sm:$0xff]
        %v387 = vld [vmem:[%s383 + $0x18] sm:$0xff]
        %v388 = vld [vmem:[%s367] sm:$0x1]
        %s389 = scalar_lea.vmem %s367, 1
        %v390 = vld [vmem:[%s389] sm:$0x1]
        %p391 = scmp.eq.s32.totalorder %s28, 0
        // Predicated region
        $region49: #{tpu_custom_call.1} parent=47 // pred_check
          %p392 = pneg %p391
        $region50: #{tpu_custom_call.1} parent=47 // pred_check_branch
          %394 = sbr.rel (%p392) target = $region52
        $region51: #{tpu_custom_call.1} parent=47 // pred_region
          %v395 = vld [vmem:[%s358] sm:$0xff]
          %v397 = vperm.slane %v390, 0
          %vm399 = vcmask 261120
          %v401 = vsel %vm399, %v395, 0
          %403 = vmatpush.msra.mxu0 0.0
          %404 = vmatpush.msra.mxu0 0.0
          %405 = vmatpush.msra.mxu0 0.0
          %406 = vmatpush.msra.mxu0 0.0
          %407 = vmatpush.msra.mxu0 0.0
          %408 = vmatpush.msra.mxu0 0.0
          %409 = vmatpush.msra.mxu0 0.0
          %410 = vmatpush.msra.mxu0 0.0
          %411 = vmatpush.msra.mxu0 0.0
          %412 = vmatpush.msra.mxu0 0.0
          %413 = vmatpush.msra.mxu0 0.0
          %414 = vmatpush.msra.mxu0 0.0
          %415 = vmatpush.msra.mxu0 %v387
          %416 = vmatpush.msra.mxu0 %v386
          %417 = vmatpush.msra.mxu0 %v385
          %418 = vmatpush.msra.mxu0 %v384
          %419 = vmatmul.f32.gmra.mxu0 %v401
          %v420 = vpop.f32.mrf.mxu0
          %v421 = vadd.f32 %v397, %v420
          %422 = vdwg.mxu0
          %v423 = vld [vmem:[%s3] sm:$0xff]
          %v424 = vld [vmem:[%s4] sm:$0xff]
          %v425 = vmul.f32 %v421, %v423
          %427 = vrot.lane.b32.xlu0 %v424, 4
          %v428 = vpop.permute.xlu0 %427
          %v430 = vmul.f32 %v421, %v428
          %432 = vrot.lane.b32.xlu0 %v430, 124
          %v433 = vpop.permute.xlu0 %432
          %v435 = vsub.f32 %v425, %v433
          %437 = vrot.lane.b32.xlu0 %v423, 4
          %v438 = vpop.permute.xlu0 %437
          %v440 = vmul.f32 %v421, %v438
          %v441 = vmul.f32 %v421, %v424
          %443 = vrot.lane.b32.xlu0 %v441, 4
          %v444 = vpop.permute.xlu0 %443
          %v446 = vadd.f32 %v440, %v444
          %vm447 = vcmask 31744
          %v448 = vsel %vm447, %v435, %v446
          %v449 = vld [vmem:[%s371] sm:$0xff]
          %451 = vset.pattern.permute.xlu0 0
          %452 = vperm.xlu0 %451, %v449
          %v453 = vpop.permute.xlu0 %452
          %v455 = vmul.f32 %v448, %v453
          %vm456 = vcmask 64512
          %457 = vst.msk [vmem:[#allocation2] sm:$0xff] %vm456, %v455
        $region52: #{tpu_custom_call.1} parent=47 // pred_fallthru
          _
        %s458 = smul.u32 %s28, 8
        %s459 = scalar_lea.vmem %s358, %s458
        %v460 = vld [vmem:[%s459] sm:$0xff]
        %v462 = vperm.slane %v388, 0
        %vm464 = vcmask 261120
        %v466 = vsel %vm464, %v460, 0
        %468 = vmatpush.msra.mxu0 0.0
        %469 = vmatpush.msra.mxu0 0.0
        %470 = vmatpush.msra.mxu0 0.0
        %471 = vmatpush.msra.mxu0 0.0
        %472 = vmatpush.msra.mxu0 0.0
        %473 = vmatpush.msra.mxu0 0.0
        %474 = vmatpush.msra.mxu0 0.0
        %475 = vmatpush.msra.mxu0 0.0
        %476 = vmatpush.msra.mxu0 0.0
        %477 = vmatpush.msra.mxu0 0.0
        %478 = vmatpush.msra.mxu0 0.0
        %479 = vmatpush.msra.mxu0 0.0
        %480 = vmatpush.msra.mxu0 %v382
        %481 = vmatpush.msra.mxu0 %v381
        %482 = vmatpush.msra.mxu0 %v380
        %483 = vmatpush.msra.mxu0 %v379
        %484 = vmatmul.f32.gmra.mxu0 %v466
        %v485 = vpop.f32.mrf.mxu0
        %v486 = vadd.f32 %v462, %v485
        %487 = vdwg.mxu0
        %s488 = scalar_lea.vmem %s3, %s458
        %v489 = vld [vmem:[%s488] sm:$0xff]
        %s490 = scalar_lea.vmem %s4, %s458
        %v491 = vld [vmem:[%s490] sm:$0xff]
        %v492 = vmul.f32 %v486, %v489
        %494 = vrot.lane.b32.xlu0 %v491, 4
        %v495 = vpop.permute.xlu0 %494
        %v497 = vmul.f32 %v486, %v495
        %499 = vrot.lane.b32.xlu0 %v497, 124
        %v500 = vpop.permute.xlu0 %499
        %v502 = vsub.f32 %v492, %v500
        %504 = vrot.lane.b32.xlu0 %v489, 4
        %v505 = vpop.permute.xlu0 %504
        %v507 = vmul.f32 %v486, %v505
        %v508 = vmul.f32 %v486, %v491
        %510 = vrot.lane.b32.xlu0 %v508, 4
        %v511 = vpop.permute.xlu0 %510
        %v513 = vadd.f32 %v507, %v511
        %vm514 = vcmask 31744
        %v515 = vsel %vm514, %v502, %v513
        %s516 = scalar_lea.vmem %s371, %s458
        %v517 = vld [vmem:[%s516] sm:$0xff]
        %519 = vset.pattern.permute.xlu0 0
        %520 = vperm.xlu0 %519, %v517
        %v521 = vpop.permute.xlu0 %520
        %v523 = vmul.f32 %v515, %v521
        %v524 = vld [vmem:[#allocation2] sm:$0xff]
        %v525 = vld [vmem:[%s378] sm:$0xff]
        %vm526 = vcmask 64512
        %v528 = vsel %vm526, %v523, 0
        %v531 = vsel %vm526, %v524, 0
        %533 = vmatpush.xpose.msra.mxu0 0.0
        %534 = vmatpush.xpose.msra.mxu0 0.0
        %535 = vmatpush.xpose.msra.mxu0 0.0
        %536 = vmatpush.xpose.msra.mxu0 0.0
        %537 = vmatpush.xpose.msra.mxu0 0.0
        %538 = vmatpush.xpose.msra.mxu0 0.0
        %539 = vmatpush.xpose.msra.mxu0 0.0
        %540 = vmatpush.xpose.msra.mxu0 0.0
        %541 = vmatpush.xpose.msra.mxu0 0.0
        %542 = vmatpush.xpose.msra.mxu0 0.0
        %543 = vmatpush.xpose.msra.mxu0 0.0
        %544 = vmatpush.xpose.msra.mxu0 0.0
        %545 = vmatpush.xpose.msra.mxu0 0.0
        %546 = vmatpush.xpose.msra.mxu0 0.0
        %547 = vmatpush.xpose.msra.mxu0 0.0
        %548 = vmatpush.xpose.msra.mxu0 %v531
        %549 = vmatmul.f32.gmra.mxu0 %v528
        %v550 = vpop.f32.mrf.mxu0
        %v551 = vadd.f32 %v525, %v550
        %552 = vdwg.mxu0
        %553 = vst.msk [vmem:[%s354] sm:$0xff] %vm526, %v551
        %s554 = sand.u32 %s226, 1
        %s555 = scalar_lea.sflag [#allocation4], %s554
        %s556 = sand.u32 %s226, 1
        %s557 = smul.addr %s556, 8
        %s558 = scalar_lea.vmem [#allocation3], %s557
        // Predicated region
        $region53: #{tpu_custom_call.1} parent=47 // pred_check
          %p559 = pneg %p236
        $region54: #{tpu_custom_call.1} parent=47 // pred_check_branch
          %561 = sbr.rel (%p559) target = $region56
        $region55: #{tpu_custom_call.1} parent=47 // pred_region
          %563 = vsyncadd %s555, 0
          %s564 = sadd.s32 %s28, %s27
          %s565 = smul.addr %s26, 4
          %s566 = sadd.s32 %s564, %s565
          %s567 = smul.addr %s566, 8
          %s568 = scalar_lea.hbm %s7, %s567
          %s570 = sshll.u32 %s558, 4
          %s571 = int_to_ptr.vmem [resolvable:$true] %s570
          %s572 = sshll.u32 %s568, 4
          %s573 = int_to_ptr.hbm [resolvable:$true] %s572
          %575 = dma.vmem_to_hbm [thread:$0]  %s571, 128, %s573, %s555
        $region56: #{tpu_custom_call.1} parent=47 // pred_fallthru
          _
      $region48: #{tpu_custom_call.1} parent=5 // pred_fallthru
        _
      %p576 = scmp.le.s32.totalorder 2, %s16
      // Predicated region
      $region57: #{tpu_custom_call.1} parent=5 // pred_check
        %p577 = pneg %p576
      $region58: #{tpu_custom_call.1} parent=5 // pred_check_branch
        %579 = sbr.rel (%p577) target = $region60
      $region59: #{tpu_custom_call.1} parent=5 // pred_region
        %s580 = ssub.s32 %s16, 2
        // Predicated region
        $region61: #{tpu_custom_call.1} parent=59 // pred_check
          %p581 = pneg %p242
        $region62: #{tpu_custom_call.1} parent=59 // pred_check_branch
          %583 = sbr.rel (%p581) target = $region64
        $region63: #{tpu_custom_call.1} parent=59 // pred_region
          %s584 = sand.u32 %s227, 1
          %s585 = scalar_lea.sflag [#allocation4], %s584
          %s586 = sand.u32 %s227, 1
          %s587 = smul.addr %s586, 8
          %s588 = scalar_lea.vmem [#allocation3], %s587
          %590 = dma.done %s585, 128
        $region64: #{tpu_custom_call.1} parent=59 // pred_fallthru
          _
      $region60: #{tpu_custom_call.1} parent=5 // pred_fallthru
        _
    $region6: #{tpu_custom_call.1} parent=1 // loop_footer
      %s20 = sadd.s32 1, %s16
    $region7: #{tpu_custom_call.1} parent=1 // loop_footer_branch
      %15 = sbr.rel target = $region3
    $region8: #{tpu_custom_call.1} parent=1 // loop_exit
      _
    %591 = vsyncpa [#allocation4], 1
    %s592 = scalar_lea.sflag [#allocation4], 1
    %593 = vsyncpa %s592, 1

</llo_original>
